<compile_context>
chip_gen: v7x
topology: tpu7x:2x2x1
jax: 0.10.0
libtpu: 0.0.40
codegen_flags: <defaults>
</compile_context>

<pallas_src>
import jax
import jax.numpy as jnp
from jax.experimental import pallas as pl
from jax.experimental.pallas import tpu as pltpu


TM_TARGET = 1024   # lane-axis (M) tile; review-suggested 512-2048 range
K_ALIGN = 16       # pad contraction dim to the bf16 sublane pack


# ----------------------------- Pallas kernel ------------------------------- #

def _fused_enc_dec_kernel(x_ref, we_ref, be_ref, wd_ref, bd_ref, o_ref):
    """One M-tile of: logits = Wd @ ReLU(We @ X + be) + bd  (all transposed).

    x_ref : (1, Kp, TM)  bf16   conv taps, M on lanes
    we_ref: (C_enc, Kp)  bf16   encoder weight (transposed)
    be_ref: (C_enc, 1)   f32
    wd_ref: (n_cls, C_enc) bf16 decoder weight (transposed)
    bd_ref: (n_cls, 1)   f32
    o_ref : (1, n_cls, TM) f32  logits tile, M on lanes (lane-dense store)
    """
    x = x_ref[0]                                                   # (Kp, TM)
    # encoder: MXU matmul, f32 accumulate; bias + ReLU epilogue stays f32
    h = jnp.dot(we_ref[...], x, preferred_element_type=jnp.float32)  # (C_enc, TM)
    h = jnp.maximum(h + be_ref[...], 0.0)
    # decoder: second MXU matmul in the same kernel body (intermediate never
    # leaves VMEM/vregs), f32 accumulate
    y = jnp.dot(wd_ref[...], h.astype(wd_ref.dtype),
                preferred_element_type=jnp.float32)                 # (n_cls, TM)
    o_ref[0] = (y + bd_ref[...]).astype(o_ref.dtype)


# ------------------------------- Glue (JAX) -------------------------------- #

def _round_up(x, m):
    return ((x + m - 1) // m) * m


def _conv_taps_nchw_s2_p1(x_nchw):
    """3x3 / stride-2 / pad-1 taps, gathered channel-major from NCHW.

    Returns (N, 9*C, Ho*Wo): contraction-major, spatial-minor — exactly the
    transposed ("M on lanes") operand the kernel wants.  K ordering is
    (kh, kw, cin), matching w_enc.reshape(9*C, C_enc).
    """
    N, C, H, W = x_nchw.shape
    Ho = (H + 2 - 3) // 2 + 1
    Wo = (W + 2 - 3) // 2 + 1
    xp = jnp.pad(x_nchw, ((0, 0), (0, 0), (1, 1), (1, 1)))
    taps = []
    for dh in range(3):
        for dw in range(3):
            taps.append(xp[:, :, dh:dh + 2 * Ho - 1:2, dw:dw + 2 * Wo - 1:2])
    patches = jnp.concatenate(taps, axis=1)            # (N, 9C, Ho, Wo)
    return patches.reshape(N, 9 * C, Ho * Wo), Ho, Wo


def segmentation_forward(x_nchw, params):
    """Forward of Segmentation: decoder(encoder(x)). Input/output are NCHW."""
    w_enc, b_enc, w_dec, b_dec = (params["w_enc"], params["b_enc"],
                                  params["w_dec"], params["b_dec"])
    N, C_in, H, W = x_nchw.shape
    assert H % 2 == 0 and W % 2 == 0, "even spatial dims required (2x upsample)"
    C_enc = w_enc.shape[-1]
    n_cls = w_dec.shape[-1]

    # ---- gather conv taps (stays channels-first, already transposed) ----
    patches, Ho, Wo = _conv_taps_nchw_s2_p1(x_nchw)    # (N, K, M_sp) f32
    K = patches.shape[1]
    M_sp = Ho * Wo

    # pad contraction dim to the bf16 pack, spatial dim to the lane tile
    Kp = _round_up(K, K_ALIGN)
    TM = min(TM_TARGET, _round_up(M_sp, 128))
    Mp = _round_up(M_sp, TM)
    patches = jnp.pad(patches, ((0, 0), (0, Kp - K), (0, Mp - M_sp)))
    patches = patches.astype(jnp.bfloat16)

    # transposed weights (bf16 MXU operands) / column biases (f32 epilogue)
    w_enc_t = jnp.pad(w_enc, ((0, Kp - K), (0, 0))).T.astype(jnp.bfloat16)  # (C_enc, Kp)
    w_dec_t = w_dec.T.astype(jnp.bfloat16)                                   # (n_cls, C_enc)
    b_enc_c = b_enc.reshape(C_enc, 1).astype(jnp.float32)
    b_dec_c = b_dec.reshape(n_cls, 1).astype(jnp.float32)

    grid = (N, Mp // TM)
    logits_flat = pl.pallas_call(
        _fused_enc_dec_kernel,
        out_shape=jax.ShapeDtypeStruct((N, n_cls, Mp), jnp.float32),
        grid=grid,
        in_specs=[
            pl.BlockSpec((1, Kp, TM), lambda n, m: (n, 0, m)),
            pl.BlockSpec((C_enc, Kp), lambda n, m: (0, 0)),
            pl.BlockSpec((C_enc, 1), lambda n, m: (0, 0)),
            pl.BlockSpec((n_cls, C_enc), lambda n, m: (0, 0)),
            pl.BlockSpec((n_cls, 1), lambda n, m: (0, 0)),
        ],
        out_specs=pl.BlockSpec((1, n_cls, TM), lambda n, m: (n, 0, m)),
        compiler_params=pltpu.CompilerParams(
            dimension_semantics=("parallel", "parallel"),
            vmem_limit_bytes=32 * 1024 * 1024,
        ),
    )(patches, w_enc_t, b_enc_c, w_dec_t, b_dec_c)

    # ---- strip padding; 2x nearest upsample as ONE broadcast+reshape pass ----
    logits = logits_flat[:, :, :M_sp].reshape(N, n_cls, Ho, Wo)
    up = jnp.broadcast_to(logits[:, :, :, None, :, None],
                          (N, n_cls, Ho, 2, Wo, 2))
    return up.reshape(N, n_cls, 2 * Ho, 2 * Wo)        # already NCHW


def init_params(key, c_in=4, c_enc=32, n_cls=4):
    """Deterministic synthetic parameters (shapes follow the conv defs above)."""
    k1, k2, k3, k4 = jax.random.split(key, 4)
    # encoder conv3x3 weight (kh, kw, cin, cout) -> (9*cin, cout): the K order
    # (kh, kw, cin) matches the tap concatenation in _conv_taps_nchw_s2_p1.
    w_enc = 0.1 * jax.random.normal(k1, (3, 3, c_in, c_enc), jnp.float32)
    b_enc = 0.01 * jax.random.normal(k2, (c_enc,), jnp.float32)
    w_dec = 0.1 * jax.random.normal(k3, (c_enc, n_cls), jnp.float32)
    b_dec = 0.01 * jax.random.normal(k4, (n_cls,), jnp.float32)
    return {
        "w_enc": w_enc.reshape(9 * c_in, c_enc),
        "b_enc": b_enc,
        "w_dec": w_dec,
        "b_dec": b_dec,
    }


if __name__ == "__main__":
    key = jax.random.PRNGKey(0)
    k_x, k_p = jax.random.split(key)

    # small shapes: batch=2, channels=4, spatial=16 (NCHW, like PyTorch)
    x = jax.random.normal(k_x, (2, 4, 16, 16), jnp.float32)
    params = init_params(k_p, c_in=4, c_enc=32, n_cls=4)

    out = jax.jit(segmentation_forward)(x, params)
    jax.block_until_ready(out)

    assert out.shape == (2, 4, 16, 16), out.shape
    assert out.dtype == jnp.float32
    print("KERNEL_OK")
</pallas_src>

<mosaic_0001>
module attributes {stable_mosaic.version = 11 : i64} {
  func.func @_fused_enc_dec_kernel(%arg0: i32, %arg1: i32, %arg2: memref<1x48x128xbf16, #tpu.memory_space<vmem>>, %arg3: memref<32x48xbf16, #tpu.memory_space<vmem>>, %arg4: memref<32x1xf32, #tpu.memory_space<vmem>>, %arg5: memref<4x32xbf16, #tpu.memory_space<vmem>>, %arg6: memref<4x1xf32, #tpu.memory_space<vmem>>, %arg7: memref<1x4x128xf32, #tpu.memory_space<vmem>>) attributes {dimension_semantics = [#tpu.dimension_semantics<parallel>, #tpu.dimension_semantics<parallel>], iteration_bounds = array<i64: 2, 1>, scalar_prefetch = 0 : i64, scratch_operands = 0 : i64, tpu.core_type = #tpu.core_type<tc>, window_params = [{transform_indices = @transform_0, window_bounds = array<i64: 1, 48, 128>}, {pipeline_mode = #tpu.pipeline_mode<synchronous>, transform_indices = @transform_1, window_bounds = array<i64: 32, 48>}, {pipeline_mode = #tpu.pipeline_mode<synchronous>, transform_indices = @transform_2, window_bounds = array<i64: 32, 1>}, {pipeline_mode = #tpu.pipeline_mode<synchronous>, transform_indices = @transform_3, window_bounds = array<i64: 4, 32>}, {pipeline_mode = #tpu.pipeline_mode<synchronous>, transform_indices = @transform_4, window_bounds = array<i64: 4, 1>}, {transform_indices = @transform_5, window_bounds = array<i64: 1, 4, 128>}]} {
    %c0 = arith.constant 0 : index
    %c0_0 = arith.constant 0 : index
    %c0_1 = arith.constant 0 : index
    %0 = vector.load %arg2[%c0, %c0_0, %c0_1] : memref<1x48x128xbf16, #tpu.memory_space<vmem>>, vector<1x48x128xbf16>
    %1 = vector.shape_cast %0 : vector<1x48x128xbf16> to vector<48x128xbf16>
    %c0_2 = arith.constant 0 : index
    %c0_3 = arith.constant 0 : index
    %2 = vector.load %arg3[%c0_2, %c0_3] : memref<32x48xbf16, #tpu.memory_space<vmem>>, vector<32x48xbf16>
    %cst = arith.constant dense<0.000000e+00> : vector<32x128xf32>
    %3 = tpu.matmul %2, %1, %cst {dimension_numbers = #tpu.dot_dimension_numbers<[1], [0], [0], [1], [0, 0, 1, 1], [], []>} : vector<32x48xbf16>, vector<48x128xbf16>, vector<32x128xf32> -> vector<32x128xf32>
    %c0_4 = arith.constant 0 : index
    %c0_5 = arith.constant 0 : index
    %4 = vector.load %arg4[%c0_4, %c0_5] : memref<32x1xf32, #tpu.memory_space<vmem>>, vector<32x1xf32>
    %5 = vector.broadcast %4 : vector<32x1xf32> to vector<32x128xf32>
    %6 = arith.addf %3, %5 : vector<32x128xf32>
    %cst_6 = arith.constant 0.000000e+00 : f32
    %7 = vector.broadcast %cst_6 : f32 to vector<32x128xf32>
    %8 = arith.maximumf %6, %7 : vector<32x128xf32>
    %c0_7 = arith.constant 0 : index
    %c0_8 = arith.constant 0 : index
    %9 = vector.load %arg5[%c0_7, %c0_8] : memref<4x32xbf16, #tpu.memory_space<vmem>>, vector<4x32xbf16>
    %10 = arith.truncf %8 : vector<32x128xf32> to vector<32x128xbf16>
    %cst_9 = arith.constant dense<0.000000e+00> : vector<4x128xf32>
    %11 = tpu.matmul %9, %10, %cst_9 {dimension_numbers = #tpu.dot_dimension_numbers<[1], [0], [0], [1], [0, 0, 1, 1], [], []>} : vector<4x32xbf16>, vector<32x128xbf16>, vector<4x128xf32> -> vector<4x128xf32>
    %c0_10 = arith.constant 0 : index
    %c0_11 = arith.constant 0 : index
    %12 = vector.load %arg6[%c0_10, %c0_11] : memref<4x1xf32, #tpu.memory_space<vmem>>, vector<4x1xf32>
    %13 = vector.broadcast %12 : vector<4x1xf32> to vector<4x128xf32>
    %14 = arith.addf %11, %13 : vector<4x128xf32>
    %c0_12 = arith.constant 0 : index
    %c0_13 = arith.constant 0 : index
    %c0_14 = arith.constant 0 : index
    %15 = vector.load %arg7[%c0_12, %c0_13, %c0_14] : memref<1x4x128xf32, #tpu.memory_space<vmem>>, vector<1x4x128xf32>
    %16 = vector.shape_cast %15 : vector<1x4x128xf32> to vector<4x128xf32>
    %17 = vector.shape_cast %14 : vector<4x128xf32> to vector<1x4x128xf32>
    tpu.vector_store %arg7[%c0_12, %c0_13, %c0_14], %17 {strides = array<i32>} : memref<1x4x128xf32, #tpu.memory_space<vmem>>, vector<1x4x128xf32>,
    return
  }
  func.func @transform_0(%arg0: i32, %arg1: i32) -> (i32, i32, i32) {
    %c0_i32 = arith.constant 0 : i32
    %c0_i32_0 = arith.constant 0 : i32
    return %arg0, %c0_i32, %arg1 : i32, i32, i32
  }
  func.func @transform_1(%arg0: i32, %arg1: i32) -> (i32, i32) {
    %c0_i32 = arith.constant 0 : i32
    %c0_i32_0 = arith.constant 0 : i32
    %c0_i32_1 = arith.constant 0 : i32
    return %c0_i32, %c0_i32_0 : i32, i32
  }
  func.func @transform_2(%arg0: i32, %arg1: i32) -> (i32, i32) {
    %c0_i32 = arith.constant 0 : i32
    %c0_i32_0 = arith.constant 0 : i32
    %c0_i32_1 = arith.constant 0 : i32
    return %c0_i32, %c0_i32_0 : i32, i32
  }
  func.func @transform_3(%arg0: i32, %arg1: i32) -> (i32, i32) {
    %c0_i32 = arith.constant 0 : i32
    %c0_i32_0 = arith.constant 0 : i32
    %c0_i32_1 = arith.constant 0 : i32
    return %c0_i32, %c0_i32_0 : i32, i32
  }
  func.func @transform_4(%arg0: i32, %arg1: i32) -> (i32, i32) {
    %c0_i32 = arith.constant 0 : i32
    %c0_i32_0 = arith.constant 0 : i32
    %c0_i32_1 = arith.constant 0 : i32
    return %c0_i32, %c0_i32_0 : i32, i32
  }
  func.func @transform_5(%arg0: i32, %arg1: i32) -> (i32, i32, i32) {
    %c0_i32 = arith.constant 0 : i32
    %c0_i32_0 = arith.constant 0 : i32
    return %arg0, %c0_i32, %arg1 : i32, i32, i32
  }
}

</mosaic_0001>

<llo_original>
// kernel: segmentation_forward.1
$region0: #{segmentation_forward.1}
  #allocation0 [shape = 'u32[]', space=smem, size = 0x4, offset = 0x4, fixed_abs, tag = 'smem constant byte address 0x4 - core index']
  #allocation1 [shape = 'u32[144,128]{1,0:T(1,128)}', space=vmem, size = 0x12000, scoped, tag = 'internal scratch']
  %s0 = inlined_call_operand.vmem [shape: bf16[2,48,128], index: 0, kind: input, shape index: {}]
  %s1 = inlined_call_operand.vmem [shape: bf16[32,48], index: 1, kind: input, shape index: {}]
  %s2 = inlined_call_operand.vmem [shape: f32[32,1], index: 2, kind: input, shape index: {}]
  %s3 = inlined_call_operand.vmem [shape: bf16[4,32], index: 3, kind: input, shape index: {}]
  %s4 = inlined_call_operand.vmem [shape: f32[4,1], index: 4, kind: input, shape index: {}]
  %s5 = inlined_call_operand.vmem [shape: f32[2,4,128], index: 5, kind: output, shape index: {}]
  %s6 = sld [smem:[#allocation0]]
  $region53: #{segmentation_forward.1} parent=0
    _
  %s8 = ssub.s32 1, %s6
  %s9 = scalar_select 0, %s8, %s6
  loop: start=0, step=1, limit=4
  $region2: #{segmentation_forward.1} parent=0 // loop_pre_header
    _
  $region3: #{segmentation_forward.1} parent=0 // loop_header
    %s11 = sphi 0, %s15
    %p12 = scmp.ge.s32.totalorder %s11, 4
    %s18 = sphi 0, %s30
    %s19 = sphi 0, %s26
    %s20 = sphi 0, %s18
    %s21 = sphi 0, %s19
    %s22 = sphi 0, %s20
    %s23 = sphi 0, %s21
    %s35 = sphi 0, %s37
    %s38 = sphi 0, %s35
    %s39 = sphi 0, %s38
    %s55 = sphi 0, %s39
    %s59 = sphi 0, %s59
    %s61 = sphi 0, %s59
    %s62 = sphi 0, %s61
    %s76 = sphi 0, %s62
    %s80 = sphi 0, %s80
    %s82 = sphi 0, %s80
    %s83 = sphi 0, %s82
    %s97 = sphi 0, %s83
    %s101 = sphi 0, %s101
    %s103 = sphi 0, %s101
    %s104 = sphi 0, %s103
    %s118 = sphi 0, %s104
    %s122 = sphi 0, %s122
    %s124 = sphi 0, %s122
    %s125 = sphi 0, %s124
    %s139 = sphi 0, %s125
    %s147 = sphi 0, %s149
    %s150 = sphi 0, %s147
    %s151 = sphi 0, %s150
    %s167 = sphi 0, %s151
  $region4: #{segmentation_forward.1} parent=0 // loop_header_branch
    %14 = sbr.rel (%p12) target = $region8
  $region5: #{segmentation_forward.1} parent=0 // loop_body
    %s16 = ssub.s32 %s11, 1
    %s17 = ssub.s32 %s11, 2
    %s24 = sadd.s32 1, %s19
    %p25 = scmp.ge.s32.totalorder %s24, 1
    %s26 = scalar_select %p25, 0, %s24
    %s27 = sadd.s32 1, %s18
    %s28 = scalar_select %p25, %s27, %s18
    %p29 = scmp.ge.s32.totalorder %s28, 2
    %s30 = scalar_select %p29, 0, %s28
    %s31 = ssub.s32 %s18, %s30
    %s32 = ssub.s32 %s19, %s26
    %s33 = sor.u32 %s31, %s32
    %p34 = scmp.eq.s32.totalorder %s33, 0
    %s36 = sadd.s32 %s35, 1
    %s37 = scalar_select %p34, %s35, %s36
    %p40 = pneg %p34
    %p41 = scmp.eq.s32.totalorder %s11, 1
    %p42 = por %p40, %p41
    %p43 = scmp.ne.s32.totalorder %s35, %s38
    %p44 = scmp.eq.s32.totalorder %s11, 0
    %p45 = por %p43, %p44
    %p46 = scmp.ne.s32.totalorder %s35, %s38
    %p47 = scmp.eq.s32.totalorder %s16, 1
    %p48 = por %p46, %p47
    %p49 = scmp.ne.s32.totalorder %s38, %s39
    %p50 = scmp.eq.s32.totalorder %s16, 0
    %p51 = por %p49, %p50
    %p52 = scmp.ne.s32.totalorder %s38, %s39
    %p53 = scmp.eq.s32.totalorder %s17, 1
    %p54 = por %p52, %p53
    %p56 = scmp.ne.s32.totalorder %s39, %s55
    %p57 = scmp.eq.s32.totalorder %s17, 0
    %p58 = por %p56, %p57
    %s60 = sadd.s32 %s59, 1
    %p63 = scmp.eq.s32.totalorder %s11, 1
    %p64 = scmp.ne.s32.totalorder %s59, %s61
    %p65 = scmp.eq.s32.totalorder %s11, 0
    %p66 = por %p64, %p65
    %p67 = scmp.ne.s32.totalorder %s59, %s61
    %p68 = scmp.eq.s32.totalorder %s16, 1
    %p69 = por %p67, %p68
    %p70 = scmp.ne.s32.totalorder %s61, %s62
    %p71 = scmp.eq.s32.totalorder %s16, 0
    %p72 = por %p70, %p71
    %p73 = scmp.ne.s32.totalorder %s61, %s62
    %p74 = scmp.eq.s32.totalorder %s17, 1
    %p75 = por %p73, %p74
    %p77 = scmp.ne.s32.totalorder %s62, %s76
    %p78 = scmp.eq.s32.totalorder %s17, 0
    %p79 = por %p77, %p78
    %s81 = sadd.s32 %s80, 1
    %p84 = scmp.eq.s32.totalorder %s11, 1
    %p85 = scmp.ne.s32.totalorder %s80, %s82
    %p86 = scmp.eq.s32.totalorder %s11, 0
    %p87 = por %p85, %p86
    %p88 = scmp.ne.s32.totalorder %s80, %s82
    %p89 = scmp.eq.s32.totalorder %s16, 1
    %p90 = por %p88, %p89
    %p91 = scmp.ne.s32.totalorder %s82, %s83
    %p92 = scmp.eq.s32.totalorder %s16, 0
    %p93 = por %p91, %p92
    %p94 = scmp.ne.s32.totalorder %s82, %s83
    %p95 = scmp.eq.s32.totalorder %s17, 1
    %p96 = por %p94, %p95
    %p98 = scmp.ne.s32.totalorder %s83, %s97
    %p99 = scmp.eq.s32.totalorder %s17, 0
    %p100 = por %p98, %p99
    %s102 = sadd.s32 %s101, 1
    %p105 = scmp.eq.s32.totalorder %s11, 1
    %p106 = scmp.ne.s32.totalorder %s101, %s103
    %p107 = scmp.eq.s32.totalorder %s11, 0
    %p108 = por %p106, %p107
    %p109 = scmp.ne.s32.totalorder %s101, %s103
    %p110 = scmp.eq.s32.totalorder %s16, 1
    %p111 = por %p109, %p110
    %p112 = scmp.ne.s32.totalorder %s103, %s104
    %p113 = scmp.eq.s32.totalorder %s16, 0
    %p114 = por %p112, %p113
    %p115 = scmp.ne.s32.totalorder %s103, %s104
    %p116 = scmp.eq.s32.totalorder %s17, 1
    %p117 = por %p115, %p116
    %p119 = scmp.ne.s32.totalorder %s104, %s118
    %p120 = scmp.eq.s32.totalorder %s17, 0
    %p121 = por %p119, %p120
    %s123 = sadd.s32 %s122, 1
    %p126 = scmp.eq.s32.totalorder %s11, 1
    %p127 = scmp.ne.s32.totalorder %s122, %s124
    %p128 = scmp.eq.s32.totalorder %s11, 0
    %p129 = por %p127, %p128
    %p130 = scmp.ne.s32.totalorder %s122, %s124
    %p131 = scmp.eq.s32.totalorder %s16, 1
    %p132 = por %p130, %p131
    %p133 = scmp.ne.s32.totalorder %s124, %s125
    %p134 = scmp.eq.s32.totalorder %s16, 0
    %p135 = por %p133, %p134
    %p136 = scmp.ne.s32.totalorder %s124, %s125
    %p137 = scmp.eq.s32.totalorder %s17, 1
    %p138 = por %p136, %p137
    %p140 = scmp.ne.s32.totalorder %s125, %s139
    %p141 = scmp.eq.s32.totalorder %s17, 0
    %p142 = por %p140, %p141
    %s143 = ssub.s32 %s18, %s30
    %s144 = ssub.s32 %s19, %s26
    %s145 = sor.u32 %s143, %s144
    %p146 = scmp.eq.s32.totalorder %s145, 0
    %s148 = sadd.s32 %s147, 1
    %s149 = scalar_select %p146, %s147, %s148
    %p152 = pneg %p146
    %p153 = scmp.eq.s32.totalorder %s11, 1
    %p154 = por %p152, %p153
    %p155 = scmp.ne.s32.totalorder %s147, %s150
    %p156 = scmp.eq.s32.totalorder %s11, 0
    %p157 = por %p155, %p156
    %p158 = scmp.ne.s32.totalorder %s147, %s150
    %p159 = scmp.eq.s32.totalorder %s16, 1
    %p160 = por %p158, %p159
    %p161 = scmp.ne.s32.totalorder %s150, %s151
    %p162 = scmp.eq.s32.totalorder %s16, 0
    %p163 = por %p161, %p162
    %p164 = scmp.ne.s32.totalorder %s150, %s151
    %p165 = scmp.eq.s32.totalorder %s17, 1
    %p166 = por %p164, %p165
    %p168 = scmp.ne.s32.totalorder %s151, %s167
    %p169 = scmp.eq.s32.totalorder %s17, 0
    %p170 = por %p168, %p169
    %p171 = scmp.le.s32.totalorder 1, %s11
    %p172 = scmp.lt.s32.totalorder %s11, 3
    %p173 = pnand %p171, %p172
    %p174 = pneg %p173
    // Predicated region
    $region9: #{segmentation_forward.1} parent=5 // pred_check
      _
    $region10: #{segmentation_forward.1} parent=5 // pred_check_branch
      %176 = sbr.rel (%p173) target = $region12
    $region11: #{segmentation_forward.1} parent=5 // pred_region
      %s177 = ssub.s32 %s11, 1
      // Predicated region
      $region13: #{segmentation_forward.1} parent=11 // pred_check
        %p178 = pneg %p72
      $region14: #{segmentation_forward.1} parent=11 // pred_check_branch
        %180 = sbr.rel (%p178) target = $region16
      $region15: #{segmentation_forward.1} parent=11 // pred_region
        _
      $region16: #{segmentation_forward.1} parent=11 // pred_fallthru
        _
      // Predicated region
      $region17: #{segmentation_forward.1} parent=11 // pred_check
        %p181 = pneg %p93
      $region18: #{segmentation_forward.1} parent=11 // pred_check_branch
        %183 = sbr.rel (%p181) target = $region20
      $region19: #{segmentation_forward.1} parent=11 // pred_region
        _
      $region20: #{segmentation_forward.1} parent=11 // pred_fallthru
        _
      // Predicated region
      $region21: #{segmentation_forward.1} parent=11 // pred_check
        %p184 = pneg %p114
      $region22: #{segmentation_forward.1} parent=11 // pred_check_branch
        %186 = sbr.rel (%p184) target = $region24
      $region23: #{segmentation_forward.1} parent=11 // pred_region
        _
      $region24: #{segmentation_forward.1} parent=11 // pred_fallthru
        _
      // Predicated region
      $region25: #{segmentation_forward.1} parent=11 // pred_check
        %p187 = pneg %p135
      $region26: #{segmentation_forward.1} parent=11 // pred_check_branch
        %189 = sbr.rel (%p187) target = $region28
      $region27: #{segmentation_forward.1} parent=11 // pred_region
        _
      $region28: #{segmentation_forward.1} parent=11 // pred_fallthru
        _
    $region12: #{segmentation_forward.1} parent=5 // pred_fallthru
      _
    %p190 = scmp.lt.s32.totalorder %s11, 2
    // Predicated region
    $region29: #{segmentation_forward.1} parent=5 // pred_check
      %p191 = pneg %p190
    $region30: #{segmentation_forward.1} parent=5 // pred_check_branch
      %193 = sbr.rel (%p191) target = $region32
    $region31: #{segmentation_forward.1} parent=5 // pred_region
      // Predicated region
      $region33: #{segmentation_forward.1} parent=31 // pred_check
        %p194 = pneg %p45
      $region34: #{segmentation_forward.1} parent=31 // pred_check_branch
        %196 = sbr.rel (%p194) target = $region36
      $region35: #{segmentation_forward.1} parent=31 // pred_region
        %p197 = scmp.lt.s32.totalorder %s18, 1
        %s198 = scalar_select %p197, %s18, 1
        %p199 = scmp.lt.s32.totalorder %s19, 0
        %s200 = scalar_select %p199, %s19, 0
        %s201 = smul.addr %s198, 6
        %s202 = sadd.s32 %s200, %s201
        %s203 = smul.addr %s202, 4
        %s204 = scalar_lea.vmem %s0, %s203
      $region36: #{segmentation_forward.1} parent=31 // pred_fallthru
        _
    $region32: #{segmentation_forward.1} parent=5 // pred_fallthru
      _
    %p205 = scmp.le.s32.totalorder 1, %s11
    %p206 = scmp.lt.s32.totalorder %s11, 3
    %p207 = pnand %p205, %p206
    %p208 = pneg %p207
    // Predicated region
    $region37: #{segmentation_forward.1} parent=5 // pred_check
      _
    $region38: #{segmentation_forward.1} parent=5 // pred_check_branch
      %210 = sbr.rel (%p207) target = $region40
    $region39: #{segmentation_forward.1} parent=5 // pred_region
      %s211 = ssub.s32 %s11, 1
      %p212 = scmp.lt.s32.totalorder %s20, 1
      %s213 = scalar_select %p212, %s20, 1
      %p214 = scmp.lt.s32.totalorder %s21, 0
      %s215 = scalar_select %p214, %s21, 0
      %s216 = smul.addr %s213, 6
      %s217 = sadd.s32 %s215, %s216
      %s218 = smul.addr %s217, 4
      %s219 = scalar_lea.vmem %s0, %s218
      %p220 = pneg %p51
      %p221 = pneg %p48
      %p222 = pneg %p72
      %p223 = pneg %p69
      %p224 = pneg %p93
      %p225 = pneg %p90
      %p226 = pneg %p114
      %p227 = pneg %p111
      %p228 = pneg %p135
      %p229 = pneg %p132
      %p230 = pneg %p163
      %p231 = pneg %p160
      %p232 = scmp.lt.s32.totalorder %s20, 1
      %s233 = scalar_select %p232, %s20, 1
      %p234 = scmp.lt.s32.totalorder %s21, 0
      %s235 = scalar_select %p234, %s21, 0
      %s236 = sadd.s32 %s235, %s233
      %s237 = smul.addr %s236, 4
      %s238 = scalar_lea.vmem %s5, %s237
      %p239 = scmp.lt.s32.totalorder %s20, 1
      %s240 = scalar_select %p239, %s20, 1
      %p241 = scmp.lt.s32.totalorder %s21, 0
      %s242 = scalar_select %p241, %s21, 0
      %s243 = smul.addr %s240, 6
      %s244 = sadd.s32 %s242, %s243
      %s245 = smul.addr %s244, 4
      %s246 = scalar_lea.vmem %s0, %s245
      %p247 = scmp.lt.s32.totalorder %s20, 1
      %s248 = scalar_select %p247, %s20, 1
      %p249 = scmp.lt.s32.totalorder %s21, 0
      %s250 = scalar_select %p249, %s21, 0
      %s251 = sadd.s32 %s250, %s248
      %s252 = smul.addr %s251, 4
      %s253 = scalar_lea.vmem %s5, %s252
      %v255 = vld [vmem:[%s246] sm:$0xf]
      %v256 = vld [vmem:[%s246 + $0x4] sm:$0xf]
      %v257 = vld [vmem:[%s246 + $0x8] sm:$0xf]
      %v258 = vld [vmem:[%s246 + $0xc] sm:$0xf]
      %v259 = vld [vmem:[%s246 + $0x10] sm:$0xf]
      %v260 = vld [vmem:[%s246 + $0x14] sm:$0xf]
      %v261 = vld [vmem:[%s1] sm:$0xf]
      %v262 = vld [vmem:[%s1 + $0x4] sm:$0xf]
      %v263 = vld [vmem:[%s1 + $0x8] sm:$0xf]
      %v264 = vld [vmem:[%s1 + $0xc] sm:$0xf]
      %v265 = vld [vmem:[%s2] sm:$0xff]
      %v266 = vld [vmem:[%s2 + $0x8] sm:$0xff]
      %v267 = vld [vmem:[%s2 + $0x10] sm:$0xff]
      %v268 = vld [vmem:[%s2 + $0x18] sm:$0xff]
      %270 = vset.pattern.permute.xlu0 0
      %271 = vperm.xlu0 %270, %v265
      %v272 = vpop.permute.xlu0 %271
      %275 = vset.pattern.permute.xlu0 0
      %276 = vperm.xlu0 %275, %v266
      %v277 = vpop.permute.xlu0 %276
      %280 = vset.pattern.permute.xlu0 0
      %281 = vperm.xlu0 %280, %v267
      %v282 = vpop.permute.xlu0 %281
      %285 = vset.pattern.permute.xlu0 0
      %286 = vperm.xlu0 %285, %v268
      %v287 = vpop.permute.xlu0 %286
      %v293 = vunpack.c.l.b16 %v261
      %v294 = vunpack.c.l.b16 %v262
      %v295 = vunpack.c.l.b16 %v263
      %v296 = vunpack.c.l.b16 %v264
      %v297 = vpack.c.b16 %v294, %v293
      %v298 = vpack.c.b16 %v296, %v295
      %v305 = vunpack.c.l.b16 %v255
      %v306 = vunpack.c.l.b16 %v256
      %v307 = vunpack.c.l.b16 %v257
      %v308 = vunpack.c.l.b16 %v258
      %v309 = vunpack.c.l.b16 %v259
      %v310 = vunpack.c.l.b16 %v260
      %v311 = vpack.c.b16 %v306, %v305
      %v312 = vpack.c.b16 %v308, %v307
      %v313 = vpack.c.b16 %v310, %v309
      %vm317 = vcmask 392192
      %v319 = vsel %vm317, %v297, 0
      %v322 = vsel %vm317, %v298, 0
      %324 = vmatprep.subr.bf16.mxu0 0
      %325 = vmatpush1.bf16.msra.mxu0 %v311
      %326 = vmatprep.subr.bf16.mxu0 0
      %327 = vmatpush1.bf16.msra.mxu0 %v312
      %328 = vmatprep.subr.bf16.mxu0 0
      %329 = vmatpush1.bf16.msra.mxu0 %v313
      %330 = vmatprep.subr.bf16.mxu0 0
      %331 = vmatpush1.bf16.msra.mxu0 0
      %332 = vmatprep.subr.bf16.mxu0 0
      %333 = vmatpush1.bf16.msra.mxu0 0
      %334 = vmatprep.subr.bf16.mxu0 0
      %335 = vmatpush1.bf16.msra.mxu0 0
      %336 = vmatprep.subr.bf16.mxu0 0
      %337 = vmatpush1.bf16.msra.mxu0 0
      %338 = vmatprep.subr.bf16.mxu0 0
      %339 = vmatpush1.bf16.msra.mxu0 0
      %340 = vmatprep.subr.bf16.mxu0 0
      %341 = vmatpush1.bf16.msra.mxu0 0
      %342 = vmatprep.subr.bf16.mxu0 0
      %343 = vmatpush1.bf16.msra.mxu0 0
      %344 = vmatprep.subr.bf16.mxu0 0
      %345 = vmatpush1.bf16.msra.mxu0 0
      %346 = vmatprep.subr.bf16.mxu0 0
      %347 = vmatpush1.bf16.msra.mxu0 0
      %348 = vmatprep.subr.bf16.mxu0 0
      %349 = vmatpush1.bf16.msra.mxu0 0
      %350 = vmatprep.subr.bf16.mxu0 0
      %351 = vmatpush1.bf16.msra.mxu0 0
      %352 = vmatprep.subr.bf16.mxu0 0
      %353 = vmatpush1.bf16.msra.mxu0 0
      %354 = vmatprep.subr.bf16.mxu0 0
      %355 = vmatpush1.bf16.msra.mxu0 0
      %356 = vmatprep.mubr.bf16.mxu0 0
      %357 = vmatmul.mubr.bf16.gmra.mrb[0].mxu0 %v319
      %v358 = vpop.f32.mrb[0].mxu0
      %v359 = vadd.f32 %v272, %v358
      %v360 = vpop.f32.mrb[0].mxu0
      %v361 = vpop.f32.mrb[0].mxu0
      %v362 = vadd.f32 %v277, %v361
      %v363 = vpop.f32.mrb[0].mxu0
      %364 = vmatprep.mubr.bf16.mxu0 0
      %365 = vmatmul.mubr.bf16.gmra.mrb[0].mxu0 %v322
      %v366 = vpop.f32.mrb[0].mxu0
      %v367 = vadd.f32 %v282, %v366
      %v368 = vpop.f32.mrb[0].mxu0
      %v369 = vpop.f32.mrb[0].mxu0
      %v370 = vadd.f32 %v287, %v369
      %v371 = vpop.f32.mrb[0].mxu0
      %372 = vdwg.mxu0
      %v373 = vmax.f32 %v359, 0.0
      %v374 = vmax.f32 %v362, 0.0
      %v375 = vmax.f32 %v367, 0.0
      %v376 = vmax.f32 %v370, 0.0
      %v377 = vld [vmem:[%s3] sm:$0x3]
      %v378 = vpack.c.bf16 %v374, %v373
      %v379 = vpack.c.bf16 %v376, %v375
      %v380 = vld [vmem:[%s4] sm:$0xf]
      %382 = vset.pattern.permute.xlu0 0
      %383 = vperm.xlu0 %382, %v380
      %v384 = vpop.permute.xlu0 %383
      %vm386 = vcmask 261120
      %v388 = vsel %vm386, %v377, 0
      %390 = vmatprep.subr.bf16.mxu0 0
      %391 = vmatpush1.bf16.msra.mxu0 %v378
      %392 = vmatprep.subr.bf16.mxu0 0
      %393 = vmatpush1.bf16.msra.mxu0 %v379
      %394 = vmatprep.subr.bf16.mxu0 0
      %395 = vmatpush1.bf16.msra.mxu0 0
      %396 = vmatprep.subr.bf16.mxu0 0
      %397 = vmatpush1.bf16.msra.mxu0 0
      %398 = vmatprep.subr.bf16.mxu0 0
      %399 = vmatpush1.bf16.msra.mxu0 0
      %400 = vmatprep.subr.bf16.mxu0 0
      %401 = vmatpush1.bf16.msra.mxu0 0
      %402 = vmatprep.subr.bf16.mxu0 0
      %403 = vmatpush1.bf16.msra.mxu0 0
      %404 = vmatprep.subr.bf16.mxu0 0
      %405 = vmatpush1.bf16.msra.mxu0 0
      %406 = vmatprep.subr.bf16.mxu0 0
      %407 = vmatpush1.bf16.msra.mxu0 0
      %408 = vmatprep.subr.bf16.mxu0 0
      %409 = vmatpush1.bf16.msra.mxu0 0
      %410 = vmatprep.subr.bf16.mxu0 0
      %411 = vmatpush1.bf16.msra.mxu0 0
      %412 = vmatprep.subr.bf16.mxu0 0
      %413 = vmatpush1.bf16.msra.mxu0 0
      %414 = vmatprep.subr.bf16.mxu0 0
      %415 = vmatpush1.bf16.msra.mxu0 0
      %416 = vmatprep.subr.bf16.mxu0 0
      %417 = vmatpush1.bf16.msra.mxu0 0
      %418 = vmatprep.subr.bf16.mxu0 0
      %419 = vmatpush1.bf16.msra.mxu0 0
      %420 = vmatprep.subr.bf16.mxu0 0
      %421 = vmatpush1.bf16.msra.mxu0 0
      %422 = vmatprep.mubr.bf16.mxu0 0
      %423 = vmatmul.mubr.bf16.gmra.mrb[0].mxu0 %v388
      %v424 = vpop.f32.mrb[0].mxu0
      %v425 = vadd.f32 %v384, %v424
      %v426 = vpop.f32.mrb[0].mxu0
      %v427 = vpop.f32.mrb[0].mxu0
      %v428 = vpop.f32.mrb[0].mxu0
      %429 = vdwg.mxu0
      %430 = vst [vmem:[%s253] sm:$0xf] %v425
      %p431 = scmp.lt.s32.totalorder %s20, 1
      %s432 = scalar_select %p431, %s20, 1
      %p433 = scmp.lt.s32.totalorder %s21, 0
      %s434 = scalar_select %p433, %s21, 0
      %s435 = sadd.s32 %s434, %s432
      %s436 = smul.addr %s435, 4
      %s437 = scalar_lea.vmem %s5, %s436
      // Predicated region
      $region41: #{segmentation_forward.1} parent=39 // pred_check
        %p438 = pneg %p160
      $region42: #{segmentation_forward.1} parent=39 // pred_check_branch
        %440 = sbr.rel (%p438) target = $region44
      $region43: #{segmentation_forward.1} parent=39 // pred_region
        _
      $region44: #{segmentation_forward.1} parent=39 // pred_fallthru
        _
    $region40: #{segmentation_forward.1} parent=5 // pred_fallthru
      _
    %p441 = scmp.le.s32.totalorder 2, %s11
    // Predicated region
    $region45: #{segmentation_forward.1} parent=5 // pred_check
      %p442 = pneg %p441
    $region46: #{segmentation_forward.1} parent=5 // pred_check_branch
      %444 = sbr.rel (%p442) target = $region48
    $region47: #{segmentation_forward.1} parent=5 // pred_region
      %s445 = ssub.s32 %s11, 2
      // Predicated region
      $region49: #{segmentation_forward.1} parent=47 // pred_check
        %p446 = pneg %p166
      $region50: #{segmentation_forward.1} parent=47 // pred_check_branch
        %448 = sbr.rel (%p446) target = $region52
      $region51: #{segmentation_forward.1} parent=47 // pred_region
        %p449 = scmp.lt.s32.totalorder %s22, 1
        %s450 = scalar_select %p449, %s22, 1
        %p451 = scmp.lt.s32.totalorder %s23, 0
        %s452 = scalar_select %p451, %s23, 0
        %s453 = sadd.s32 %s452, %s450
        %s454 = smul.addr %s453, 4
        %s455 = scalar_lea.vmem %s5, %s454
      $region52: #{segmentation_forward.1} parent=47 // pred_fallthru
        _
    $region48: #{segmentation_forward.1} parent=5 // pred_fallthru
      _
  $region6: #{segmentation_forward.1} parent=0 // loop_footer
    %s15 = sadd.s32 1, %s11
  $region7: #{segmentation_forward.1} parent=0 // loop_footer_branch
    %10 = sbr.rel target = $region3
  $region8: #{segmentation_forward.1} parent=0 // loop_exit
    _

</llo_original>
